<compile_context>
chip_gen: v7x
topology: tpu7x:2x2x1
jax: 0.10.0
libtpu: 0.0.40
codegen_flags: <defaults>
</compile_context>

<pallas_src>
import functools

import jax
import jax.numpy as jnp
from jax.experimental import pallas as pl
from jax.experimental.pallas import tpu as pltpu

# ---------------- small config consistent with the module --------------------
CODEBOOK_SIZE = 256      # codebook_size (N)
CODEBOOK_DIM = 128       # codebook_dim  (D) -- lane-dense on TPU
B = 2
T = 16


def _round_up(x, k):
    return ((x + k - 1) // k) * k


# ---- kernel 1: project the codebook ONCE (tiny single launch) ----------------
def _codebook_proj_kernel(cbw_ref, wpT_ref, bp_ref,          # inputs
                          cb_ref, cbTm2_ref, c2_ref):        # outputs
    cb = jnp.dot(cbw_ref[...], wpT_ref[...],
                 preferred_element_type=jnp.float32) + bp_ref[...]      # (N, D)
    cb_ref[...] = cb
    cbT = cb.T                                                          # (D, N) one-time XLU transpose
    cbTm2_ref[...] = -2.0 * cbT                                         # fold the -2 scale here
    c2_ref[...] = jnp.sum(cbT * cbT, axis=0, keepdims=True)             # (1, N) ||c||^2 row


# ---- kernel 2: per-M-tile VQ (parallel across tiles) --------------------------
def _vq_tile_kernel(z_ref, cb_ref, cbTm2_ref, c2_ref,        # inputs
                    zq_ref, idx_ref, losspart_ref,           # outputs
                    *, m_valid):
    tm, d = z_ref.shape
    n_codes = cb_ref.shape[0]

    z = z_ref[...]                                                       # (tm, D) f32

    # L2 nearest codeword: dist (up to a row-constant ||e||^2) = ||c||^2 - 2 e.c
    # cbTm2 is pre-scaled by -2, so this is one MXU matmul + one add.
    dist = jnp.dot(z, cbTm2_ref[...],
                   preferred_element_type=jnp.float32) + c2_ref[...]     # (tm, N)

    # argmin over the lane axis with first-index tie-breaking (matches torch).
    col = jax.lax.broadcasted_iota(jnp.int32, dist.shape, 1).astype(jnp.float32)
    min_d = jnp.min(dist, axis=-1, keepdims=True)                        # (tm, 1)
    idx_f = jnp.min(jnp.where(dist == min_d, col, float(n_codes)),
                    axis=-1, keepdims=True)                              # (tm, 1)

    # z_q = codebook[idx] as a one-hot @ codebook MXU matmul (no gather).
    onehot = (col == idx_f).astype(jnp.float32)                          # (tm, N)
    zq = jnp.dot(onehot, cb_ref[...], preferred_element_type=jnp.float32)  # (tm, D)

    zq_ref[...] = zq
    idx_ref[...] = idx_f.astype(jnp.int32)

    # Lane-dense per-tile loss partial: sum |zq - z| over rows, folded into an
    # (8, D) slab (sublane-group sum only; cross-lane reduce happens once in
    # the wrapper).  Padded rows (last tile only) are masked out of the loss.
    absdiff = jnp.abs(zq - z)
    if m_valid % tm != 0:
        i = pl.program_id(0)
        row = jax.lax.broadcasted_iota(jnp.int32, (tm, 1), 0) + i * tm
        absdiff = absdiff * (row < m_valid).astype(jnp.float32)
    losspart_ref[...] = jnp.sum(absdiff.reshape(tm // 8, 8, d), axis=0)   # (8, D)


# ------------------------------- wrapper --------------------------------------
def vector_quantize_forward(z_e, cb_weight, w_projT, b_proj):
    """Forward of VectorQuantize (loss_type='l2').

    z_e:       (B, T, D) f32
    cb_weight: (N, D)    f32  -- nn.Embedding weight
    w_projT:   (D, D)    f32  -- codebook_proj weight, pre-transposed (in, out)
    b_proj:    (D,)      f32
    Returns (z_q (B, T, D) f32, loss_vq scalar f32, indices (B, T) int32).
    """
    b, t, d = z_e.shape
    n = cb_weight.shape[0]
    m = b * t

    z2d = z_e.reshape(m, d).astype(jnp.float32)
    bp = b_proj.reshape(1, d).astype(jnp.float32)

    # ---- stage 1: project the codebook once (tiny launch, <=256 KiB outputs).
    cb, cbTm2, c2 = pl.pallas_call(
        _codebook_proj_kernel,
        out_shape=(
            jax.ShapeDtypeStruct((n, d), jnp.float32),   # projected codebook
            jax.ShapeDtypeStruct((d, n), jnp.float32),   # -2 * codebook^T
            jax.ShapeDtypeStruct((1, n), jnp.float32),   # ||c||^2 row
        ),
    )(cb_weight.astype(jnp.float32), w_projT.astype(jnp.float32), bp)

    # ---- stage 2: M-parallel tile kernel.
    # Larger tiles amortize per-step overhead; cap at 2048 rows so the (tm, N)
    # f32 intermediates + double-buffered I/O stay well inside v7x's 64 MiB VMEM.
    tm = 2048 if m > 2048 else _round_up(m, 8)
    m_pad = _round_up(m, tm)
    if m_pad != m:
        z2d = jnp.pad(z2d, ((0, m_pad - m), (0, 0)))
    num_tiles = m_pad // tm

    kernel = functools.partial(_vq_tile_kernel, m_valid=m)

    compiler_params = pltpu.CompilerParams(
        # No carried state -> the M axis is fully parallel (2x on v7x megacore).
        dimension_semantics=("parallel",),
        # v5e's default scoped VMEM is 16 MiB; raise it for the larger tiles.
        vmem_limit_bytes=(48 * 1024 * 1024) if tm >= 1024 else None,
    )

    zq2d, idx2d, loss_parts = pl.pallas_call(
        kernel,
        out_shape=(
            jax.ShapeDtypeStruct((m_pad, d), jnp.float32),       # z_q
            jax.ShapeDtypeStruct((m_pad, 1), jnp.int32),         # indices (narrow; <1% of traffic)
            jax.ShapeDtypeStruct((num_tiles * 8, d), jnp.float32),  # per-tile loss partials
        ),
        grid=(num_tiles,),
        in_specs=[
            pl.BlockSpec((tm, d), lambda i: (i, 0)),   # z_e tile
            pl.BlockSpec((n, d), lambda i: (0, 0)),    # projected codebook (resident)
            pl.BlockSpec((d, n), lambda i: (0, 0)),    # -2 * codebook^T (resident)
            pl.BlockSpec((1, n), lambda i: (0, 0)),    # ||c||^2 row (resident)
        ],
        out_specs=(
            pl.BlockSpec((tm, d), lambda i: (i, 0)),
            pl.BlockSpec((tm, 1), lambda i: (i, 0)),
            pl.BlockSpec((8, d), lambda i: (i, 0)),
        ),
        compiler_params=compiler_params,
    )(z2d, cb, cbTm2, c2)

    z_q = zq2d[:m].reshape(b, t, d)
    # Straight-through estimator: forward value of z_e + (z_q - z_e).detach()
    # is exactly z_q; gradient routing is a training-time (autograd) concern.
    indices = idx2d[:m, 0].reshape(b, t)
    # loss_vq = l1(z_q, z_e) + 0.25 * l1(z_e, z_q) = 1.25 * mean|z_q - z_e|
    loss_vq = (1.25 / float(m * d)) * jnp.sum(loss_parts)
    return z_q, loss_vq, indices


# --------------------------------- main ---------------------------------------
if __name__ == "__main__":
    key = jax.random.PRNGKey(0)
    k1, k2, k3, k4 = jax.random.split(key, 4)
    z_e = jax.random.normal(k1, (B, T, CODEBOOK_DIM), jnp.float32)
    cb_weight = jax.random.normal(k2, (CODEBOOK_SIZE, CODEBOOK_DIM), jnp.float32)
    w_projT = jax.random.normal(k3, (CODEBOOK_DIM, CODEBOOK_DIM), jnp.float32) * 0.05
    b_proj = jax.random.normal(k4, (CODEBOOK_DIM,), jnp.float32) * 0.05

    fwd = jax.jit(vector_quantize_forward)
    z_q, loss_vq, indices = fwd(z_e, cb_weight, w_projT, b_proj)
    (z_q, loss_vq, indices) = jax.block_until_ready((z_q, loss_vq, indices))

    # ---- pure-JAX reference (same math as the PyTorch forward) ----
    cb_ref = cb_weight @ w_projT + b_proj
    enc = z_e.reshape(-1, CODEBOOK_DIM)
    dist_ref = (jnp.sum(enc ** 2, axis=1, keepdims=True)
                + jnp.sum(cb_ref ** 2, axis=1)
                - 2.0 * enc @ cb_ref.T)
    ref_idx = jnp.argmin(dist_ref, axis=1).reshape(B, T)
    ref_zq = cb_ref[ref_idx]
    ref_loss = 1.25 * jnp.mean(jnp.abs(ref_zq - z_e))

    assert z_q.shape == (B, T, CODEBOOK_DIM) and z_q.dtype == jnp.float32
    assert indices.shape == (B, T) and indices.dtype == jnp.int32
    assert bool(jnp.all(jnp.isfinite(z_q))) and bool(jnp.isfinite(loss_vq))
    assert bool(jnp.all(indices == ref_idx)), "indices mismatch vs reference"
    assert bool(jnp.allclose(z_q, ref_zq, atol=1e-3, rtol=1e-3)), "z_q mismatch"
    assert bool(jnp.allclose(loss_vq, ref_loss, atol=1e-3, rtol=1e-3)), "loss mismatch"
    # TODO(synk): detach()/straight-through gradient routing is autograd-side and
    # not representable in a forward Pallas kernel.
    print("KERNEL_OK")
</pallas_src>

<mosaic_0001>
module attributes {stable_mosaic.version = 11 : i64} {
  func.func @_vq_tile_kernel(%arg0: i32, %arg1: memref<32x128xf32, #tpu.memory_space<vmem>>, %arg2: memref<256x128xf32, #tpu.memory_space<vmem>>, %arg3: memref<128x256xf32, #tpu.memory_space<vmem>>, %arg4: memref<1x256xf32, #tpu.memory_space<vmem>>, %arg5: memref<32x128xf32, #tpu.memory_space<vmem>>, %arg6: memref<32x1xi32, #tpu.memory_space<vmem>>, %arg7: memref<8x128xf32, #tpu.memory_space<vmem>>) attributes {dimension_semantics = [#tpu.dimension_semantics<parallel>], iteration_bounds = array<i64: 1>, scalar_prefetch = 0 : i64, scratch_operands = 0 : i64, tpu.core_type = #tpu.core_type<tc>, window_params = [{transform_indices = @transform_0, window_bounds = array<i64: 32, 128>}, {pipeline_mode = #tpu.pipeline_mode<synchronous>, transform_indices = @transform_1, window_bounds = array<i64: 256, 128>}, {pipeline_mode = #tpu.pipeline_mode<synchronous>, transform_indices = @transform_2, window_bounds = array<i64: 128, 256>}, {pipeline_mode = #tpu.pipeline_mode<synchronous>, transform_indices = @transform_3, window_bounds = array<i64: 1, 256>}, {transform_indices = @transform_4, window_bounds = array<i64: 32, 128>}, {transform_indices = @transform_5, window_bounds = array<i64: 32, 1>}, {transform_indices = @transform_6, window_bounds = array<i64: 8, 128>}]} {
    %c0 = arith.constant 0 : index
    %c0_0 = arith.constant 0 : index
    %0 = vector.load %arg1[%c0, %c0_0] : memref<32x128xf32, #tpu.memory_space<vmem>>, vector<32x128xf32>
    %c0_1 = arith.constant 0 : index
    %c0_2 = arith.constant 0 : index
    %1 = vector.load %arg3[%c0_1, %c0_2] : memref<128x256xf32, #tpu.memory_space<vmem>>, vector<128x256xf32>
    %cst = arith.constant dense<0.000000e+00> : vector<32x256xf32>
    %2 = tpu.matmul %0, %1, %cst {dimension_numbers = #tpu.dot_dimension_numbers<[1], [0], [0], [1], [0, 0, 1, 1], [], []>} : vector<32x128xf32>, vector<128x256xf32>, vector<32x256xf32> -> vector<32x256xf32>
    %c0_3 = arith.constant 0 : index
    %c0_4 = arith.constant 0 : index
    %3 = vector.load %arg4[%c0_3, %c0_4] : memref<1x256xf32, #tpu.memory_space<vmem>>, vector<1x256xf32>
    %4 = vector.broadcast %3 : vector<1x256xf32> to vector<32x256xf32>
    %5 = arith.addf %2, %4 : vector<32x256xf32>
    %6 = tpu.iota {dimensions = array<i32: 1>} : vector<32x256xi32>
    %7 = arith.sitofp %6 : vector<32x256xi32> to vector<32x256xf32>
    %cst_5 = arith.constant dense<0x7F800000> : vector<32xf32>
    %8 = vector.multi_reduction <minimumf>, %5, %cst_5 [1] : vector<32x256xf32> to vector<32xf32>
    %9 = vector.shape_cast %8 : vector<32xf32> to vector<32x1xf32>
    %10 = vector.broadcast %9 : vector<32x1xf32> to vector<32x256xf32>
    %11 = arith.cmpf oeq, %5, %10 : vector<32x256xf32>
    %cst_6 = arith.constant 2.560000e+02 : f32
    %12 = vector.broadcast %cst_6 : f32 to vector<32x256xf32>
    %13 = arith.select %11, %7, %12 : vector<32x256xi1>, vector<32x256xf32>
    %cst_7 = arith.constant dense<0x7F800000> : vector<32xf32>
    %14 = vector.multi_reduction <minimumf>, %13, %cst_7 [1] : vector<32x256xf32> to vector<32xf32>
    %15 = vector.shape_cast %14 : vector<32xf32> to vector<32x1xf32>
    %16 = vector.broadcast %15 : vector<32x1xf32> to vector<32x256xf32>
    %17 = arith.cmpf oeq, %7, %16 : vector<32x256xf32>
    %18 = arith.extui %17 : vector<32x256xi1> to vector<32x256xi32>
    %19 = arith.sitofp %18 : vector<32x256xi32> to vector<32x256xf32>
    %c0_8 = arith.constant 0 : index
    %c0_9 = arith.constant 0 : index
    %20 = vector.load %arg2[%c0_8, %c0_9] : memref<256x128xf32, #tpu.memory_space<vmem>>, vector<256x128xf32>
    %cst_10 = arith.constant dense<0.000000e+00> : vector<32x128xf32>
    %21 = tpu.matmul %19, %20, %cst_10 {dimension_numbers = #tpu.dot_dimension_numbers<[1], [0], [0], [1], [0, 0, 1, 1], [], []>} : vector<32x256xf32>, vector<256x128xf32>, vector<32x128xf32> -> vector<32x128xf32>
    %c0_11 = arith.constant 0 : index
    %c0_12 = arith.constant 0 : index
    %22 = vector.load %arg5[%c0_11, %c0_12] : memref<32x128xf32, #tpu.memory_space<vmem>>, vector<32x128xf32>
    tpu.vector_store %arg5[%c0_11, %c0_12], %21 {strides = array<i32>} : memref<32x128xf32, #tpu.memory_space<vmem>>, vector<32x128xf32>,
    %23 = arith.fptosi %15 : vector<32x1xf32> to vector<32x1xi32>
    %c0_13 = arith.constant 0 : index
    %c0_14 = arith.constant 0 : index
    %24 = vector.load %arg6[%c0_13, %c0_14] : memref<32x1xi32, #tpu.memory_space<vmem>>, vector<32x1xi32>
    tpu.vector_store %arg6[%c0_13, %c0_14], %23 {strides = array<i32>} : memref<32x1xi32, #tpu.memory_space<vmem>>, vector<32x1xi32>,
    %25 = arith.subf %21, %0 : vector<32x128xf32>
    %26 = math.absf %25 : vector<32x128xf32>
    %27 = vector.shape_cast %26 : vector<32x128xf32> to vector<4x8x128xf32>
    %cst_15 = arith.constant dense<0.000000e+00> : vector<8x128xf32>
    %28 = vector.multi_reduction <add>, %27, %cst_15 [0] : vector<4x8x128xf32> to vector<8x128xf32>
    %c0_16 = arith.constant 0 : index
    %c0_17 = arith.constant 0 : index
    %29 = vector.load %arg7[%c0_16, %c0_17] : memref<8x128xf32, #tpu.memory_space<vmem>>, vector<8x128xf32>
    tpu.vector_store %arg7[%c0_16, %c0_17], %28 {strides = array<i32>} : memref<8x128xf32, #tpu.memory_space<vmem>>, vector<8x128xf32>,
    return
  }
  func.func @transform_0(%arg0: i32) -> (i32, i32) {
    %c0_i32 = arith.constant 0 : i32
    %c0_i32_0 = arith.constant 0 : i32
    return %arg0, %c0_i32 : i32, i32
  }
  func.func @transform_1(%arg0: i32) -> (i32, i32) {
    %c0_i32 = arith.constant 0 : i32
    %c0_i32_0 = arith.constant 0 : i32
    %c0_i32_1 = arith.constant 0 : i32
    return %c0_i32, %c0_i32_0 : i32, i32
  }
  func.func @transform_2(%arg0: i32) -> (i32, i32) {
    %c0_i32 = arith.constant 0 : i32
    %c0_i32_0 = arith.constant 0 : i32
    %c0_i32_1 = arith.constant 0 : i32
    return %c0_i32, %c0_i32_0 : i32, i32
  }
  func.func @transform_3(%arg0: i32) -> (i32, i32) {
    %c0_i32 = arith.constant 0 : i32
    %c0_i32_0 = arith.constant 0 : i32
    %c0_i32_1 = arith.constant 0 : i32
    return %c0_i32, %c0_i32_0 : i32, i32
  }
  func.func @transform_4(%arg0: i32) -> (i32, i32) {
    %c0_i32 = arith.constant 0 : i32
    %c0_i32_0 = arith.constant 0 : i32
    return %arg0, %c0_i32 : i32, i32
  }
  func.func @transform_5(%arg0: i32) -> (i32, i32) {
    %c0_i32 = arith.constant 0 : i32
    %c0_i32_0 = arith.constant 0 : i32
    return %arg0, %c0_i32 : i32, i32
  }
  func.func @transform_6(%arg0: i32) -> (i32, i32) {
    %c0_i32 = arith.constant 0 : i32
    %c0_i32_0 = arith.constant 0 : i32
    return %arg0, %c0_i32 : i32, i32
  }
}

module attributes {stable_mosaic.version = 11 : i64} {
  func.func @_codebook_proj_kernel(%arg0: memref<256x128xf32, #tpu.memory_space<vmem>>, %arg1: memref<128x128xf32, #tpu.memory_space<vmem>>, %arg2: memref<1x128xf32, #tpu.memory_space<vmem>>, %arg3: memref<256x128xf32, #tpu.memory_space<vmem>>, %arg4: memref<128x256xf32, #tpu.memory_space<vmem>>, %arg5: memref<1x256xf32, #tpu.memory_space<vmem>>) attributes {dimension_semantics = [], scalar_prefetch = 0 : i64, scratch_operands = 0 : i64, tpu.core_type = #tpu.core_type<tc>} {
    %c0 = arith.constant 0 : index
    %c0_0 = arith.constant 0 : index
    %0 = vector.load %arg0[%c0, %c0_0] : memref<256x128xf32, #tpu.memory_space<vmem>>, vector<256x128xf32>
    %c0_1 = arith.constant 0 : index
    %c0_2 = arith.constant 0 : index
    %1 = vector.load %arg1[%c0_1, %c0_2] : memref<128x128xf32, #tpu.memory_space<vmem>>, vector<128x128xf32>
    %cst = arith.constant dense<0.000000e+00> : vector<256x128xf32>
    %2 = tpu.matmul %0, %1, %cst {dimension_numbers = #tpu.dot_dimension_numbers<[1], [0], [0], [1], [0, 0, 1, 1], [], []>} : vector<256x128xf32>, vector<128x128xf32>, vector<256x128xf32> -> vector<256x128xf32>
    %c0_3 = arith.constant 0 : index
    %c0_4 = arith.constant 0 : index
    %3 = vector.load %arg2[%c0_3, %c0_4] : memref<1x128xf32, #tpu.memory_space<vmem>>, vector<1x128xf32>
    %4 = vector.broadcast %3 : vector<1x128xf32> to vector<256x128xf32>
    %5 = arith.addf %2, %4 : vector<256x128xf32>
    %c0_5 = arith.constant 0 : index
    %c0_6 = arith.constant 0 : index
    %6 = vector.load %arg3[%c0_5, %c0_6] : memref<256x128xf32, #tpu.memory_space<vmem>>, vector<256x128xf32>
    tpu.vector_store %arg3[%c0_5, %c0_6], %5 {strides = array<i32>} : memref<256x128xf32, #tpu.memory_space<vmem>>, vector<256x128xf32>,
    %7 = tpu.transpose %5, [1, 0] : vector<256x128xf32> -> vector<128x256xf32>
    %cst_7 = arith.constant -2.000000e+00 : f32
    %8 = vector.broadcast %cst_7 : f32 to vector<128x256xf32>
    %9 = arith.mulf %8, %7 : vector<128x256xf32>
    %c0_8 = arith.constant 0 : index
    %c0_9 = arith.constant 0 : index
    %10 = vector.load %arg4[%c0_8, %c0_9] : memref<128x256xf32, #tpu.memory_space<vmem>>, vector<128x256xf32>
    tpu.vector_store %arg4[%c0_8, %c0_9], %9 {strides = array<i32>} : memref<128x256xf32, #tpu.memory_space<vmem>>, vector<128x256xf32>,
    %11 = arith.mulf %7, %7 : vector<128x256xf32>
    %cst_10 = arith.constant dense<0.000000e+00> : vector<256xf32>
    %12 = vector.multi_reduction <add>, %11, %cst_10 [0] : vector<128x256xf32> to vector<256xf32>
    %13 = vector.shape_cast %12 : vector<256xf32> to vector<1x256xf32>
    %c0_11 = arith.constant 0 : index
    %c0_12 = arith.constant 0 : index
    %14 = vector.load %arg5[%c0_11, %c0_12] : memref<1x256xf32, #tpu.memory_space<vmem>>, vector<1x256xf32>
    tpu.vector_store %arg5[%c0_11, %c0_12], %13 {strides = array<i32>} : memref<1x256xf32, #tpu.memory_space<vmem>>, vector<1x256xf32>,
    return
  }
}

</mosaic_0001>

<llo_original>
// kernel: squeeze.1
$region0: #{squeeze.1}
  %s0 = inlined_call_operand.vmem [shape: s32[32], index: 0, kind: input, shape index: {}]
  %s1 = inlined_call_operand.hbm [shape: s32[2,16], index: 1, kind: output, shape index: {}]
  $region1: #{squeeze.1} parent=0
    #allocation0 [shape = 'u8[1024]{0}', space=vmem, size = 0x400, scoped, tag = 'operand span for operand 1']
    #allocation1 [shape = 's32[1]{0}', space=sflag, size = 0x4, scoped, tag = 'scoped memory for squeeze.1']
    #allocation2 [shape = 'u8[4096]{0}', space=vmem, size = 0x1000, scoped, tag = 'scoped mem for output reshape']
    #allocation3 [shape = 'u8[4096]{0}', space=vmem, size = 0x1000, scoped, tag = 'scoped mem for input reshape']
    %2 = vsyncpa [#allocation1], 0
    %s4 = sshllo.u32 0, 1
    %v5 = vld [vmem:[%s0] sm:%s4]
    %6 = vst [vmem:[#allocation3] sm:%s4] %v5
    %v7 = vld [vmem:[#allocation3] sm:$0x1]
    %vm8 = vcmask 130048
    %9 = vst.msk [vmem:[#allocation2] sm:$0x1] %vm8, %v7
    %v10 = vld [vmem:[#allocation3] sm:$0x1]
    %11 = vrot.lane.b32.xlu0 %v10, 112
    %v12 = vpop.permute.xlu0 %11
    %vm13 = vcmask 130048
    %s14 = scalar_lea.vmem [#allocation2], 1
    %15 = vst.msk [vmem:[%s14] sm:$0x1] %vm13, %v12
    %s17 = sshllo.u32 0, 2
    %v19 = vld [vmem:[#allocation2] sm:%s17]
    %s20 = sshllo.u32 0, 2
    %21 = vst [vmem:[#allocation0] sm:%s20] %v19
    %s23 = ssub.s32 32, 32
    %24 = vsyncadd [#allocation1], %s23
    %s26 = sshll.u32 [#allocation0], 4
    %s27 = int_to_ptr.vmem [resolvable:$true] %s26
    %29 = dma.vmem_to_hbm [thread:$0]  %s27, 32, %s1, [#allocation1]
    %30 = dma.done [#allocation1], 32
    %31 = vsyncpa [#allocation1], 1

// kernel: vector_quantize_forward.3
$region0: #{vector_quantize_forward.3}
  #allocation0 [shape = 'u32[]', space=smem, size = 0x4, offset = 0x4, fixed_abs, tag = 'smem constant byte address 0x4 - core index']
  #allocation1 [shape = 'u32[144,128]{1,0:T(1,128)}', space=vmem, size = 0x12000, scoped, tag = 'internal scratch']
  %s0 = inlined_call_operand.vmem [shape: f32[32,128], index: 0, kind: input, shape index: {}]
  %s1 = inlined_call_operand.vmem [shape: f32[256,128], index: 1, kind: input, shape index: {}]
  %s2 = inlined_call_operand.vmem [shape: f32[128,256], index: 2, kind: input, shape index: {}]
  %s3 = inlined_call_operand.vmem [shape: f32[1,256], index: 3, kind: input, shape index: {}]
  %s4 = inlined_call_operand.hbm [shape: f32[32,128], index: 4, kind: output, shape index: {0}]
  %s5 = inlined_call_operand.vmem [shape: s32[32,1], index: 5, kind: output, shape index: {1}]
  %s6 = inlined_call_operand.vmem [shape: f32[8,128], index: 6, kind: output, shape index: {2}]
  %7 = xla_tuple %s4, %s5, %s6
  %s8 = sld [smem:[#allocation0]]
  $region42: #{vector_quantize_forward.3} parent=0
    _
  %s10 = ssub.s32 1, %s8
  %s11 = scalar_select 0, %s10, %s8
  $region1: #{vector_quantize_forward.3} parent=0
    #allocation2 [shape = 'u8[16384]{0}', space=vmem, size = 0x4000, scoped, tag = 'output window, operand 0, single buffered']
    #allocation3 [shape = 's32[1]{0}', space=sflag, size = 0x4, scoped, tag = 'scoped memory for vector_quantize_forward.3']
    %12 = vsyncpa [#allocation3], 0
    // Predicated region
    $region2: #{vector_quantize_forward.3} parent=1 // pred_check
      _
    $region3: #{vector_quantize_forward.3} parent=1 // pred_check_branch
      %14 = sbr.rel (0) target = $region5
    $region4: #{vector_quantize_forward.3} parent=1 // pred_region
      _
    $region5: #{vector_quantize_forward.3} parent=1 // pred_fallthru
      _
    // Predicated region
    $region6: #{vector_quantize_forward.3} parent=1 // pred_check
      _
    $region7: #{vector_quantize_forward.3} parent=1 // pred_check_branch
      %16 = sbr.rel (0) target = $region9
    $region8: #{vector_quantize_forward.3} parent=1 // pred_region
      _
    $region9: #{vector_quantize_forward.3} parent=1 // pred_fallthru
      _
    // Predicated region
    $region10: #{vector_quantize_forward.3} parent=1 // pred_check
      _
    $region11: #{vector_quantize_forward.3} parent=1 // pred_check_branch
      %18 = sbr.rel (0) target = $region13
    $region12: #{vector_quantize_forward.3} parent=1 // pred_region
      _
    $region13: #{vector_quantize_forward.3} parent=1 // pred_fallthru
      _
    // Predicated region
    $region14: #{vector_quantize_forward.3} parent=1 // pred_check
      _
    $region15: #{vector_quantize_forward.3} parent=1 // pred_check_branch
      %20 = sbr.rel (0) target = $region17
    $region16: #{vector_quantize_forward.3} parent=1 // pred_region
      _
    $region17: #{vector_quantize_forward.3} parent=1 // pred_fallthru
      _
    %v21 = vld [vmem:[%s0] sm:$0xff]
    %v22 = vld [vmem:[%s0 + $0x8] sm:$0xff]
    %v23 = vld [vmem:[%s0 + $0x10] sm:$0xff]
    %v24 = vld [vmem:[%s0 + $0x18] sm:$0xff]
    %v25 = vld [vmem:[%s2] sm:$0xff]
    %v26 = vld [vmem:[%s2 + $0x8] sm:$0xff]
    %v27 = vld [vmem:[%s2 + $0x10] sm:$0xff]
    %v28 = vld [vmem:[%s2 + $0x18] sm:$0xff]
    %v29 = vld [vmem:[%s2 + $0x20] sm:$0xff]
    %v30 = vld [vmem:[%s2 + $0x28] sm:$0xff]
    %v31 = vld [vmem:[%s2 + $0x30] sm:$0xff]
    %v32 = vld [vmem:[%s2 + $0x38] sm:$0xff]
    %v33 = vld [vmem:[%s2 + $0x40] sm:$0xff]
    %v34 = vld [vmem:[%s2 + $0x48] sm:$0xff]
    %v35 = vld [vmem:[%s2 + $0x50] sm:$0xff]
    %v36 = vld [vmem:[%s2 + $0x58] sm:$0xff]
    %v37 = vld [vmem:[%s2 + $0x60] sm:$0xff]
    %v38 = vld [vmem:[%s2 + $0x68] sm:$0xff]
    %v39 = vld [vmem:[%s2 + $0x70] sm:$0xff]
    %v40 = vld [vmem:[%s2 + $0x78] sm:$0xff]
    %v41 = vld [vmem:[%s2 + $0x80] sm:$0xff]
    %v42 = vld [vmem:[%s2 + $0x88] sm:$0xff]
    %v43 = vld [vmem:[%s2 + $0x90] sm:$0xff]
    %v44 = vld [vmem:[%s2 + $0x98] sm:$0xff]
    %v45 = vld [vmem:[%s2 + $0xa0] sm:$0xff]
    %v46 = vld [vmem:[%s2 + $0xa8] sm:$0xff]
    %v47 = vld [vmem:[%s2 + $0xb0] sm:$0xff]
    %v48 = vld [vmem:[%s2 + $0xb8] sm:$0xff]
    %v49 = vld [vmem:[%s2 + $0xc0] sm:$0xff]
    %v50 = vld [vmem:[%s2 + $0xc8] sm:$0xff]
    %v51 = vld [vmem:[%s2 + $0xd0] sm:$0xff]
    %v52 = vld [vmem:[%s2 + $0xd8] sm:$0xff]
    %v53 = vld [vmem:[%s2 + $0xe0] sm:$0xff]
    %v54 = vld [vmem:[%s2 + $0xe8] sm:$0xff]
    %v55 = vld [vmem:[%s2 + $0xf0] sm:$0xff]
    %v56 = vld [vmem:[%s2 + $0xf8] sm:$0xff]
    %v57 = vld [vmem:[%s3] sm:$0x3]
    %v59 = vlaneseq
    %v60 = vshrl.u32 %v59, 7
    %v61 = vsub.s32 0, %v60
    %v62 = vrot.slane %v57, %v61
    %v63 = vlaneseq
    %v64 = vshrl.u32 %v63, 7
    %v65 = vsub.s32 1, %v64
    %v66 = vrot.slane %v57, %v65
    %69 = vmatprep.subr.mxu0 %v26
    %70 = vmatpush1.msra.mxu0 %v25
    %71 = vmatprep.subr.mxu0 %v28
    %72 = vmatpush1.msra.mxu0 %v27
    %73 = vmatprep.subr.mxu0 %v30
    %74 = vmatpush1.msra.mxu0 %v29
    %75 = vmatprep.subr.mxu0 %v32
    %76 = vmatpush1.msra.mxu0 %v31
    %77 = vmatprep.subr.mxu0 %v34
    %78 = vmatpush1.msra.mxu0 %v33
    %79 = vmatprep.subr.mxu0 %v36
    %80 = vmatpush1.msra.mxu0 %v35
    %81 = vmatprep.subr.mxu0 %v38
    %82 = vmatpush1.msra.mxu0 %v37
    %83 = vmatprep.subr.mxu0 %v40
    %84 = vmatpush1.msra.mxu0 %v39
    %85 = vmatprep.subr.mxu0 %v42
    %86 = vmatpush1.msra.mxu0 %v41
    %87 = vmatprep.subr.mxu0 %v44
    %88 = vmatpush1.msra.mxu0 %v43
    %89 = vmatprep.subr.mxu0 %v46
    %90 = vmatpush1.msra.mxu0 %v45
    %91 = vmatprep.subr.mxu0 %v48
    %92 = vmatpush1.msra.mxu0 %v47
    %93 = vmatprep.subr.mxu0 %v50
    %94 = vmatpush1.msra.mxu0 %v49
    %95 = vmatprep.subr.mxu0 %v52
    %96 = vmatpush1.msra.mxu0 %v51
    %97 = vmatprep.subr.mxu0 %v54
    %98 = vmatpush1.msra.mxu0 %v53
    %99 = vmatprep.subr.mxu0 %v56
    %100 = vmatpush1.msra.mxu0 %v55
    %101 = vmatprep.subr.mxu0 0.0
    %102 = vmatpush1.msra.mxu0 0.0
    %103 = vmatprep.subr.mxu0 0.0
    %104 = vmatpush1.msra.mxu0 0.0
    %105 = vmatprep.subr.mxu0 0.0
    %106 = vmatpush1.msra.mxu0 0.0
    %107 = vmatprep.subr.mxu0 0.0
    %108 = vmatpush1.msra.mxu0 0.0
    %109 = vmatprep.subr.mxu0 0.0
    %110 = vmatpush1.msra.mxu0 0.0
    %111 = vmatprep.subr.mxu0 0.0
    %112 = vmatpush1.msra.mxu0 0.0
    %113 = vmatprep.subr.mxu0 0.0
    %114 = vmatpush1.msra.mxu0 0.0
    %115 = vmatprep.subr.mxu0 0.0
    %116 = vmatpush1.msra.mxu0 0.0
    %117 = vmatprep.subr.mxu0 0.0
    %118 = vmatpush1.msra.mxu0 0.0
    %119 = vmatprep.subr.mxu0 0.0
    %120 = vmatpush1.msra.mxu0 0.0
    %121 = vmatprep.subr.mxu0 0.0
    %122 = vmatpush1.msra.mxu0 0.0
    %123 = vmatprep.subr.mxu0 0.0
    %124 = vmatpush1.msra.mxu0 0.0
    %125 = vmatprep.subr.mxu0 0.0
    %126 = vmatpush1.msra.mxu0 0.0
    %127 = vmatprep.subr.mxu0 0.0
    %128 = vmatpush1.msra.mxu0 0.0
    %129 = vmatprep.subr.mxu0 0.0
    %130 = vmatpush1.msra.mxu0 0.0
    %131 = vmatprep.subr.mxu0 0.0
    %132 = vmatpush1.msra.mxu0 0.0
    %133 = vmatprep.mubr.f32.mxu0 0.0
    %134 = vmatmul.mubr.f32.gmra.mrb[0].mxu0 %v21
    %v135 = vpop.f32.mrb[0].mxu0
    %v136 = vadd.f32 %v62, %v135
    %v137 = vpop.f32.mrb[0].mxu0
    %v138 = vadd.f32 %v66, %v137
    %139 = vmatprep.mubr.f32.mxu0 0.0
    %140 = vmatmul.mubr.f32.gmra.mrb[0].mxu0 %v22
    %v141 = vpop.f32.mrb[0].mxu0
    %v142 = vadd.f32 %v62, %v141
    %v143 = vpop.f32.mrb[0].mxu0
    %v144 = vadd.f32 %v66, %v143
    %145 = vmatprep.mubr.f32.mxu0 0.0
    %146 = vmatmul.mubr.f32.gmra.mrb[0].mxu0 %v23
    %v147 = vpop.f32.mrb[0].mxu0
    %v148 = vadd.f32 %v62, %v147
    %v149 = vpop.f32.mrb[0].mxu0
    %v150 = vadd.f32 %v66, %v149
    %151 = vmatprep.mubr.f32.mxu0 0.0
    %152 = vmatmul.mubr.f32.gmra.mrb[0].mxu0 %v24
    %v153 = vpop.f32.mrb[0].mxu0
    %v154 = vadd.f32 %v62, %v153
    %v155 = vpop.f32.mrb[0].mxu0
    %v156 = vadd.f32 %v66, %v155
    %157 = vdwg.mxu0
    %v158 = vlaneseq
    %v159 = vand.u32 %v158, 127
    %v160 = vadd.s32 %v159, 128
    %v161 = vcvt.s32.f32 %v159
    %v162 = vcvt.s32.f32 %v160
    %v163 = vmin.f32 %v136, %v138
    %164 = vmin.xlane.f32.xlu0 %v163
    %v165 = vpop.xlane.xlu0 %164
    %v166 = vmin.f32 %v142, %v144
    %167 = vmin.xlane.f32.xlu0 %v166
    %v168 = vpop.xlane.xlu0 %167
    %v169 = vmin.f32 %v148, %v150
    %170 = vmin.xlane.f32.xlu0 %v169
    %v171 = vpop.xlane.xlu0 %170
    %v172 = vmin.f32 %v154, %v156
    %173 = vmin.xlane.f32.xlu0 %v172
    %v174 = vpop.xlane.xlu0 %173
    %vm175 = vcmp.eq.f32.partialorder %v136, %v165
    %vm176 = vcmp.eq.f32.partialorder %v138, %v165
    %vm177 = vcmp.eq.f32.partialorder %v142, %v168
    %vm178 = vcmp.eq.f32.partialorder %v144, %v168
    %vm179 = vcmp.eq.f32.partialorder %v148, %v171
    %vm180 = vcmp.eq.f32.partialorder %v150, %v171
    %vm181 = vcmp.eq.f32.partialorder %v154, %v174
    %vm182 = vcmp.eq.f32.partialorder %v156, %v174
    %v183 = vsel %vm175, %v161, 256.0
    %v184 = vsel %vm176, %v162, 256.0
    %v185 = vsel %vm177, %v161, 256.0
    %v186 = vsel %vm178, %v162, 256.0
    %v187 = vsel %vm179, %v161, 256.0
    %v188 = vsel %vm180, %v162, 256.0
    %v189 = vsel %vm181, %v161, 256.0
    %v190 = vsel %vm182, %v162, 256.0
    %v191 = vmin.f32 %v183, %v184
    %192 = vmin.xlane.f32.xlu0 %v191
    %v193 = vpop.xlane.xlu0 %192
    %v194 = vmin.f32 %v185, %v186
    %195 = vmin.xlane.f32.xlu0 %v194
    %v196 = vpop.xlane.xlu0 %195
    %v197 = vmin.f32 %v187, %v188
    %198 = vmin.xlane.f32.xlu0 %v197
    %v199 = vpop.xlane.xlu0 %198
    %v200 = vmin.f32 %v189, %v190
    %201 = vmin.xlane.f32.xlu0 %v200
    %v202 = vpop.xlane.xlu0 %201
    %vm203 = vcmp.eq.f32.partialorder %v161, %v193
    %vm204 = vcmp.eq.f32.partialorder %v162, %v193
    %vm205 = vcmp.eq.f32.partialorder %v161, %v196
    %vm206 = vcmp.eq.f32.partialorder %v162, %v196
    %vm207 = vcmp.eq.f32.partialorder %v161, %v199
    %vm208 = vcmp.eq.f32.partialorder %v162, %v199
    %vm209 = vcmp.eq.f32.partialorder %v161, %v202
    %vm210 = vcmp.eq.f32.partialorder %v162, %v202
    %v211 = vsel %vm203, 1, 0
    %v212 = vsel %vm204, 1, 0
    %v213 = vsel %vm205, 1, 0
    %v214 = vsel %vm206, 1, 0
    %v215 = vsel %vm207, 1, 0
    %v216 = vsel %vm208, 1, 0
    %v217 = vsel %vm209, 1, 0
    %v218 = vsel %vm210, 1, 0
    %v219 = vcvt.s32.f32 %v211
    %v220 = vcvt.s32.f32 %v212
    %v221 = vcvt.s32.f32 %v213
    %v222 = vcvt.s32.f32 %v214
    %v223 = vcvt.s32.f32 %v215
    %v224 = vcvt.s32.f32 %v216
    %v225 = vcvt.s32.f32 %v217
    %v226 = vcvt.s32.f32 %v218
    %v227 = vld [vmem:[%s1] sm:$0xff]
    %v228 = vld [vmem:[%s1 + $0x8] sm:$0xff]
    %v229 = vld [vmem:[%s1 + $0x10] sm:$0xff]
    %v230 = vld [vmem:[%s1 + $0x18] sm:$0xff]
    %v231 = vld [vmem:[%s1 + $0x20] sm:$0xff]
    %v232 = vld [vmem:[%s1 + $0x28] sm:$0xff]
    %v233 = vld [vmem:[%s1 + $0x30] sm:$0xff]
    %v234 = vld [vmem:[%s1 + $0x38] sm:$0xff]
    %v235 = vld [vmem:[%s1 + $0x40] sm:$0xff]
    %v236 = vld [vmem:[%s1 + $0x48] sm:$0xff]
    %v237 = vld [vmem:[%s1 + $0x50] sm:$0xff]
    %v238 = vld [vmem:[%s1 + $0x58] sm:$0xff]
    %v239 = vld [vmem:[%s1 + $0x60] sm:$0xff]
    %v240 = vld [vmem:[%s1 + $0x68] sm:$0xff]
    %v241 = vld [vmem:[%s1 + $0x70] sm:$0xff]
    %v242 = vld [vmem:[%s1 + $0x78] sm:$0xff]
    %v243 = vld [vmem:[%s1 + $0x80] sm:$0xff]
    %v244 = vld [vmem:[%s1 + $0x88] sm:$0xff]
    %v245 = vld [vmem:[%s1 + $0x90] sm:$0xff]
    %v246 = vld [vmem:[%s1 + $0x98] sm:$0xff]
    %v247 = vld [vmem:[%s1 + $0xa0] sm:$0xff]
    %v248 = vld [vmem:[%s1 + $0xa8] sm:$0xff]
    %v249 = vld [vmem:[%s1 + $0xb0] sm:$0xff]
    %v250 = vld [vmem:[%s1 + $0xb8] sm:$0xff]
    %v251 = vld [vmem:[%s1 + $0xc0] sm:$0xff]
    %v252 = vld [vmem:[%s1 + $0xc8] sm:$0xff]
    %v253 = vld [vmem:[%s1 + $0xd0] sm:$0xff]
    %v254 = vld [vmem:[%s1 + $0xd8] sm:$0xff]
    %v255 = vld [vmem:[%s1 + $0xe0] sm:$0xff]
    %v256 = vld [vmem:[%s1 + $0xe8] sm:$0xff]
    %v257 = vld [vmem:[%s1 + $0xf0] sm:$0xff]
    %v258 = vld [vmem:[%s1 + $0xf8] sm:$0xff]
    %259 = vmatprep.subr.mxu0 0.0
    %260 = vmatpush1.msra.mxu0 %v227
    %261 = vmatprep.subr.mxu0 0.0
    %262 = vmatpush1.msra.mxu0 %v228
    %263 = vmatprep.subr.mxu0 0.0
    %264 = vmatpush1.msra.mxu0 %v229
    %265 = vmatprep.subr.mxu0 0.0
    %266 = vmatpush1.msra.mxu0 %v230
    %267 = vmatprep.subr.mxu0 0.0
    %268 = vmatpush1.msra.mxu0 %v231
    %269 = vmatprep.subr.mxu0 0.0
    %270 = vmatpush1.msra.mxu0 %v232
    %271 = vmatprep.subr.mxu0 0.0
    %272 = vmatpush1.msra.mxu0 %v233
    %273 = vmatprep.subr.mxu0 0.0
    %274 = vmatpush1.msra.mxu0 %v234
    %275 = vmatprep.subr.mxu0 0.0
    %276 = vmatpush1.msra.mxu0 %v235
    %277 = vmatprep.subr.mxu0 0.0
    %278 = vmatpush1.msra.mxu0 %v236
    %279 = vmatprep.subr.mxu0 0.0
    %280 = vmatpush1.msra.mxu0 %v237
    %281 = vmatprep.subr.mxu0 0.0
    %282 = vmatpush1.msra.mxu0 %v238
    %283 = vmatprep.subr.mxu0 0.0
    %284 = vmatpush1.msra.mxu0 %v239
    %285 = vmatprep.subr.mxu0 0.0
    %286 = vmatpush1.msra.mxu0 %v240
    %287 = vmatprep.subr.mxu0 0.0
    %288 = vmatpush1.msra.mxu0 %v241
    %289 = vmatprep.subr.mxu0 0.0
    %290 = vmatpush1.msra.mxu0 %v242
    %291 = vmatprep.subr.mxu0 0.0
    %292 = vmatpush1.msra.mxu0 %v243
    %293 = vmatprep.subr.mxu0 0.0
    %294 = vmatpush1.msra.mxu0 %v244
    %295 = vmatprep.subr.mxu0 0.0
    %296 = vmatpush1.msra.mxu0 %v245
    %297 = vmatprep.subr.mxu0 0.0
    %298 = vmatpush1.msra.mxu0 %v246
    %299 = vmatprep.subr.mxu0 0.0
    %300 = vmatpush1.msra.mxu0 %v247
    %301 = vmatprep.subr.mxu0 0.0
    %302 = vmatpush1.msra.mxu0 %v248
    %303 = vmatprep.subr.mxu0 0.0
    %304 = vmatpush1.msra.mxu0 %v249
    %305 = vmatprep.subr.mxu0 0.0
    %306 = vmatpush1.msra.mxu0 %v250
    %307 = vmatprep.subr.mxu0 0.0
    %308 = vmatpush1.msra.mxu0 %v251
    %309 = vmatprep.subr.mxu0 0.0
    %310 = vmatpush1.msra.mxu0 %v252
    %311 = vmatprep.subr.mxu0 0.0
    %312 = vmatpush1.msra.mxu0 %v253
    %313 = vmatprep.subr.mxu0 0.0
    %314 = vmatpush1.msra.mxu0 %v254
    %315 = vmatprep.subr.mxu0 0.0
    %316 = vmatpush1.msra.mxu0 %v255
    %317 = vmatprep.subr.mxu0 0.0
    %318 = vmatpush1.msra.mxu0 %v256
    %319 = vmatprep.subr.mxu0 0.0
    %320 = vmatpush1.msra.mxu0 %v257
    %321 = vmatprep.subr.mxu0 0.0
    %322 = vmatpush1.msra.mxu0 %v258
    %323 = vmatprep.mubr.f32.mxu0 %v220
    %324 = vmatmul.mubr.f32.gmra.mrb[0].mxu0 %v219
    %v325 = vpop.f32.mrb[0].mxu0
    %v326 = vadd.f32 0.0, %v325
    %v327 = vpop.f32.mrb[0].mxu0
    %328 = vmatprep.mubr.f32.mxu0 %v222
    %329 = vmatmul.mubr.f32.gmra.mrb[0].mxu0 %v221
    %v330 = vpop.f32.mrb[0].mxu0
    %v331 = vadd.f32 0.0, %v330
    %v332 = vpop.f32.mrb[0].mxu0
    %333 = vmatprep.mubr.f32.mxu0 %v224
    %334 = vmatmul.mubr.f32.gmra.mrb[0].mxu0 %v223
    %v335 = vpop.f32.mrb[0].mxu0
    %v336 = vadd.f32 0.0, %v335
    %v337 = vpop.f32.mrb[0].mxu0
    %338 = vmatprep.mubr.f32.mxu0 %v226
    %339 = vmatmul.mubr.f32.gmra.mrb[0].mxu0 %v225
    %v340 = vpop.f32.mrb[0].mxu0
    %v341 = vadd.f32 0.0, %v340
    %v342 = vpop.f32.mrb[0].mxu0
    %343 = vdwg.mxu0
    %344 = vst [vmem:[#allocation2] sm:$0xff] %v326
    %345 = vst [vmem:[#allocation2 + $0x8] sm:$0xff] %v331
    %346 = vst [vmem:[#allocation2 + $0x10] sm:$0xff] %v336
    %347 = vst [vmem:[#allocation2 + $0x18] sm:$0xff] %v341
    %v348 = vcvt.f32.s32.to.zero.pseudo %v193
    %v349 = vcvt.f32.s32.to.zero.pseudo %v196
    %v350 = vcvt.f32.s32.to.zero.pseudo %v199
    %v351 = vcvt.f32.s32.to.zero.pseudo %v202
    %vm352 = vcmask 7168
    %353 = vst.msk [vmem:[%s5] sm:$0xff] %vm352, %v348
    %354 = vst.msk [vmem:[%s5 + $0x8] sm:$0xff] %vm352, %v349
    %355 = vst.msk [vmem:[%s5 + $0x10] sm:$0xff] %vm352, %v350
    %356 = vst.msk [vmem:[%s5 + $0x18] sm:$0xff] %vm352, %v351
    %v357 = vsub.f32 %v326, %v21
    %v358 = vsub.f32 %v331, %v22
    %v359 = vsub.f32 %v336, %v23
    %v360 = vsub.f32 %v341, %v24
    %v361 = vand.u32 2147483647, %v357
    %v362 = vand.u32 2147483647, %v358
    %v363 = vand.u32 2147483647, %v359
    %v364 = vand.u32 2147483647, %v360
    %v365 = vadd.f32 %v361, %v362
    %v366 = vadd.f32 %v365, %v363
    %v367 = vadd.f32 %v366, %v364
    %368 = vst [vmem:[%s6] sm:$0xff] %v367
    // Predicated region
    $region18: #{vector_quantize_forward.3} parent=1 // pred_check
      _
    $region19: #{vector_quantize_forward.3} parent=1 // pred_check_branch
      %370 = sbr.rel (0) target = $region21
    $region20: #{vector_quantize_forward.3} parent=1 // pred_region
      %s372 = ssub.s32 512, 512
      %373 = vsyncadd [#allocation3], %s372
      %s374 = sshll.u32 [#allocation2], 4
      %s375 = int_to_ptr.vmem [resolvable:$true] %s374
      %380 = dma.vmem_to_hbm [thread:$0]  %s375, 512, %s4, [#allocation3], 128, 128, 8
    $region21: #{vector_quantize_forward.3} parent=1 // pred_fallthru
      _
    // Predicated region
    $region22: #{vector_quantize_forward.3} parent=1 // pred_check
      _
    $region23: #{vector_quantize_forward.3} parent=1 // pred_check_branch
      %382 = sbr.rel (0) target = $region25
    $region24: #{vector_quantize_forward.3} parent=1 // pred_region
      _
    $region25: #{vector_quantize_forward.3} parent=1 // pred_fallthru
      _
    // Predicated region
    $region26: #{vector_quantize_forward.3} parent=1 // pred_check
      _
    $region27: #{vector_quantize_forward.3} parent=1 // pred_check_branch
      %384 = sbr.rel (0) target = $region29
    $region28: #{vector_quantize_forward.3} parent=1 // pred_region
      _
    $region29: #{vector_quantize_forward.3} parent=1 // pred_fallthru
      _
    // Predicated region
    $region30: #{vector_quantize_forward.3} parent=1 // pred_check
      _
    $region31: #{vector_quantize_forward.3} parent=1 // pred_check_branch
      %386 = sbr.rel (0) target = $region33
    $region32: #{vector_quantize_forward.3} parent=1 // pred_region
      %387 = dma.done [#allocation3], 512
    $region33: #{vector_quantize_forward.3} parent=1 // pred_fallthru
      _
    // Predicated region
    $region34: #{vector_quantize_forward.3} parent=1 // pred_check
      _
    $region35: #{vector_quantize_forward.3} parent=1 // pred_check_branch
      %389 = sbr.rel (0) target = $region37
    $region36: #{vector_quantize_forward.3} parent=1 // pred_region
      _
    $region37: #{vector_quantize_forward.3} parent=1 // pred_fallthru
      _
    // Predicated region
    $region38: #{vector_quantize_forward.3} parent=1 // pred_check
      _
    $region39: #{vector_quantize_forward.3} parent=1 // pred_check_branch
      %391 = sbr.rel (0) target = $region41
    $region40: #{vector_quantize_forward.3} parent=1 // pred_region
      _
    $region41: #{vector_quantize_forward.3} parent=1 // pred_fallthru
      _
    %392 = vsyncpa [#allocation3], 1

// kernel: vector_quantize_forward.2
$region0: #{vector_quantize_forward.2}
  #allocation0 [shape = 'u32[]', space=smem, size = 0x4, offset = 0x4, fixed_abs, tag = 'smem constant byte address 0x4 - core index']
  #allocation1 [shape = 'u32[144,128]{1,0:T(1,128)}', space=vmem, size = 0x12000, scoped, tag = 'internal scratch']
  %s0 = inlined_call_operand.hbm [shape: f32[256,128], index: 0, kind: input, shape index: {}]
  %s1 = inlined_call_operand.hbm [shape: f32[128,128], index: 1, kind: input, shape index: {}]
  %s2 = inlined_call_operand.vmem [shape: f32[1,128], index: 2, kind: input, shape index: {}]
  %s3 = inlined_call_operand.vmem [shape: f32[256,128], index: 3, kind: output, shape index: {0}]
  %s4 = inlined_call_operand.vmem [shape: f32[128,256], index: 4, kind: output, shape index: {1}]
  %s5 = inlined_call_operand.vmem [shape: f32[1,256], index: 5, kind: output, shape index: {2}]
  %6 = xla_tuple %s3, %s4, %s5
  %s7 = sld [smem:[#allocation0]]
  $region46: #{vector_quantize_forward.2} parent=0
    _
  %s9 = ssub.s32 1, %s7
  %s10 = scalar_select 0, %s9, %s7
  $region1: #{vector_quantize_forward.2} parent=0
    #allocation2 [shape = 'u8[131072]{0}', space=vmem, size = 0x20000, scoped, tag = 'input window, operand 0, single buffered']
    #allocation3 [shape = 's32[1]{0}', space=sflag, size = 0x4, scoped, tag = 'scoped memory for vector_quantize_forward.2']
    #allocation4 [shape = 'u8[65536]{0}', space=vmem, size = 0x10000, scoped, tag = 'input window, operand 1, single buffered']
    #allocation5 [shape = 's32[1]{0}', space=sflag, size = 0x4, scoped, tag = 'scoped memory for vector_quantize_forward.2']
    %11 = vsyncpa [#allocation3], 0
    %12 = vsyncpa [#allocation5], 0
    // Predicated region
    $region2: #{vector_quantize_forward.2} parent=1 // pred_check
      _
    $region3: #{vector_quantize_forward.2} parent=1 // pred_check_branch
      %14 = sbr.rel (0) target = $region5
    $region4: #{vector_quantize_forward.2} parent=1 // pred_region
      %s16 = ssub.s32 4096, 4096
      %17 = vsyncadd [#allocation3], %s16
      %s18 = sshll.u32 [#allocation2], 4
      %s19 = int_to_ptr.vmem [resolvable:$true] %s18
      %24 = dma.hbm_to_vmem [thread:$0]  %s0, 4096, %s19, [#allocation3], 128, 128, 8
    $region5: #{vector_quantize_forward.2} parent=1 // pred_fallthru
      _
    // Predicated region
    $region6: #{vector_quantize_forward.2} parent=1 // pred_check
      _
    $region7: #{vector_quantize_forward.2} parent=1 // pred_check_branch
      %26 = sbr.rel (0) target = $region9
    $region8: #{vector_quantize_forward.2} parent=1 // pred_region
      %s28 = ssub.s32 2048, 2048
      %29 = vsyncadd [#allocation5], %s28
      %s30 = sshll.u32 [#allocation4], 4
      %s31 = int_to_ptr.vmem [resolvable:$true] %s30
      %36 = dma.hbm_to_vmem [thread:$0]  %s1, 2048, %s31, [#allocation5], 128, 128, 8
    $region9: #{vector_quantize_forward.2} parent=1 // pred_fallthru
      _
    // Predicated region
    $region10: #{vector_quantize_forward.2} parent=1 // pred_check
      _
    $region11: #{vector_quantize_forward.2} parent=1 // pred_check_branch
      %38 = sbr.rel (0) target = $region13
    $region12: #{vector_quantize_forward.2} parent=1 // pred_region
      _
    $region13: #{vector_quantize_forward.2} parent=1 // pred_fallthru
      _
    // Predicated region
    $region14: #{vector_quantize_forward.2} parent=1 // pred_check
      _
    $region15: #{vector_quantize_forward.2} parent=1 // pred_check_branch
      %40 = sbr.rel (0) target = $region17
    $region16: #{vector_quantize_forward.2} parent=1 // pred_region
      %41 = dma.done [#allocation3], 4096
    $region17: #{vector_quantize_forward.2} parent=1 // pred_fallthru
      _
    // Predicated region
    $region18: #{vector_quantize_forward.2} parent=1 // pred_check
      _
    $region19: #{vector_quantize_forward.2} parent=1 // pred_check_branch
      %43 = sbr.rel (0) target = $region21
    $region20: #{vector_quantize_forward.2} parent=1 // pred_region
      %44 = dma.done [#allocation5], 2048
    $region21: #{vector_quantize_forward.2} parent=1 // pred_fallthru
      _
    %v45 = vld [vmem:[#allocation2] sm:$0xff]
    %v46 = vld [vmem:[#allocation2 + $0x8] sm:$0xff]
    %v47 = vld [vmem:[#allocation2 + $0x10] sm:$0xff]
    %v48 = vld [vmem:[#allocation2 + $0x18] sm:$0xff]
    %v49 = vld [vmem:[#allocation2 + $0x20] sm:$0xff]
    %v50 = vld [vmem:[#allocation2 + $0x28] sm:$0xff]
    %v51 = vld [vmem:[#allocation2 + $0x30] sm:$0xff]
    %v52 = vld [vmem:[#allocation2 + $0x38] sm:$0xff]
    %v53 = vld [vmem:[#allocation2 + $0x40] sm:$0xff]
    %v54 = vld [vmem:[#allocation2 + $0x48] sm:$0xff]
    %v55 = vld [vmem:[#allocation2 + $0x50] sm:$0xff]
    %v56 = vld [vmem:[#allocation2 + $0x58] sm:$0xff]
    %v57 = vld [vmem:[#allocation2 + $0x60] sm:$0xff]
    %v58 = vld [vmem:[#allocation2 + $0x68] sm:$0xff]
    %v59 = vld [vmem:[#allocation2 + $0x70] sm:$0xff]
    %v60 = vld [vmem:[#allocation2 + $0x78] sm:$0xff]
    %v61 = vld [vmem:[#allocation2 + $0x80] sm:$0xff]
    %v62 = vld [vmem:[#allocation2 + $0x88] sm:$0xff]
    %v63 = vld [vmem:[#allocation2 + $0x90] sm:$0xff]
    %v64 = vld [vmem:[#allocation2 + $0x98] sm:$0xff]
    %v65 = vld [vmem:[#allocation2 + $0xa0] sm:$0xff]
    %v66 = vld [vmem:[#allocation2 + $0xa8] sm:$0xff]
    %v67 = vld [vmem:[#allocation2 + $0xb0] sm:$0xff]
    %v68 = vld [vmem:[#allocation2 + $0xb8] sm:$0xff]
    %v69 = vld [vmem:[#allocation2 + $0xc0] sm:$0xff]
    %v70 = vld [vmem:[#allocation2 + $0xc8] sm:$0xff]
    %v71 = vld [vmem:[#allocation2 + $0xd0] sm:$0xff]
    %v72 = vld [vmem:[#allocation2 + $0xd8] sm:$0xff]
    %v73 = vld [vmem:[#allocation2 + $0xe0] sm:$0xff]
    %v74 = vld [vmem:[#allocation2 + $0xe8] sm:$0xff]
    %v75 = vld [vmem:[#allocation2 + $0xf0] sm:$0xff]
    %v76 = vld [vmem:[#allocation2 + $0xf8] sm:$0xff]
    %v77 = vld [vmem:[#allocation4] sm:$0xff]
    %v78 = vld [vmem:[#allocation4 + $0x8] sm:$0xff]
    %v79 = vld [vmem:[#allocation4 + $0x10] sm:$0xff]
    %v80 = vld [vmem:[#allocation4 + $0x18] sm:$0xff]
    %v81 = vld [vmem:[#allocation4 + $0x20] sm:$0xff]
    %v82 = vld [vmem:[#allocation4 + $0x28] sm:$0xff]
    %v83 = vld [vmem:[#allocation4 + $0x30] sm:$0xff]
    %v84 = vld [vmem:[#allocation4 + $0x38] sm:$0xff]
    %v85 = vld [vmem:[#allocation4 + $0x40] sm:$0xff]
    %v86 = vld [vmem:[#allocation4 + $0x48] sm:$0xff]
    %v87 = vld [vmem:[#allocation4 + $0x50] sm:$0xff]
    %v88 = vld [vmem:[#allocation4 + $0x58] sm:$0xff]
    %v89 = vld [vmem:[#allocation4 + $0x60] sm:$0xff]
    %v90 = vld [vmem:[#allocation4 + $0x68] sm:$0xff]
    %v91 = vld [vmem:[#allocation4 + $0x70] sm:$0xff]
    %v92 = vld [vmem:[#allocation4 + $0x78] sm:$0xff]
    %v93 = vld [vmem:[%s2] sm:$0x1]
    %v95 = vlaneseq
    %v96 = vshrl.u32 %v95, 7
    %v97 = vsub.s32 0, %v96
    %v98 = vrot.slane %v93, %v97
    %100 = vmatprep.subr.mxu0 0.0
    %101 = vmatpush1.msra.mxu0 %v77
    %102 = vmatprep.subr.mxu0 0.0
    %103 = vmatpush1.msra.mxu0 %v78
    %104 = vmatprep.subr.mxu0 0.0
    %105 = vmatpush1.msra.mxu0 %v79
    %106 = vmatprep.subr.mxu0 0.0
    %107 = vmatpush1.msra.mxu0 %v80
    %108 = vmatprep.subr.mxu0 0.0
    %109 = vmatpush1.msra.mxu0 %v81
    %110 = vmatprep.subr.mxu0 0.0
    %111 = vmatpush1.msra.mxu0 %v82
    %112 = vmatprep.subr.mxu0 0.0
    %113 = vmatpush1.msra.mxu0 %v83
    %114 = vmatprep.subr.mxu0 0.0
    %115 = vmatpush1.msra.mxu0 %v84
    %116 = vmatprep.subr.mxu0 0.0
    %117 = vmatpush1.msra.mxu0 %v85
    %118 = vmatprep.subr.mxu0 0.0
    %119 = vmatpush1.msra.mxu0 %v86
    %120 = vmatprep.subr.mxu0 0.0
    %121 = vmatpush1.msra.mxu0 %v87
    %122 = vmatprep.subr.mxu0 0.0
    %123 = vmatpush1.msra.mxu0 %v88
    %124 = vmatprep.subr.mxu0 0.0
    %125 = vmatpush1.msra.mxu0 %v89
    %126 = vmatprep.subr.mxu0 0.0
    %127 = vmatpush1.msra.mxu0 %v90
    %128 = vmatprep.subr.mxu0 0.0
    %129 = vmatpush1.msra.mxu0 %v91
    %130 = vmatprep.subr.mxu0 0.0
    %131 = vmatpush1.msra.mxu0 %v92
    %132 = vmatprep.subr.mxu0 0.0
    %133 = vmatpush1.msra.mxu0 0.0
    %134 = vmatprep.subr.mxu0 0.0
    %135 = vmatpush1.msra.mxu0 0.0
    %136 = vmatprep.subr.mxu0 0.0
    %137 = vmatpush1.msra.mxu0 0.0
    %138 = vmatprep.subr.mxu0 0.0
    %139 = vmatpush1.msra.mxu0 0.0
    %140 = vmatprep.subr.mxu0 0.0
    %141 = vmatpush1.msra.mxu0 0.0
    %142 = vmatprep.subr.mxu0 0.0
    %143 = vmatpush1.msra.mxu0 0.0
    %144 = vmatprep.subr.mxu0 0.0
    %145 = vmatpush1.msra.mxu0 0.0
    %146 = vmatprep.subr.mxu0 0.0
    %147 = vmatpush1.msra.mxu0 0.0
    %148 = vmatprep.subr.mxu0 0.0
    %149 = vmatpush1.msra.mxu0 0.0
    %150 = vmatprep.subr.mxu0 0.0
    %151 = vmatpush1.msra.mxu0 0.0
    %152 = vmatprep.subr.mxu0 0.0
    %153 = vmatpush1.msra.mxu0 0.0
    %154 = vmatprep.subr.mxu0 0.0
    %155 = vmatpush1.msra.mxu0 0.0
    %156 = vmatprep.subr.mxu0 0.0
    %157 = vmatpush1.msra.mxu0 0.0
    %158 = vmatprep.subr.mxu0 0.0
    %159 = vmatpush1.msra.mxu0 0.0
    %160 = vmatprep.subr.mxu0 0.0
    %161 = vmatpush1.msra.mxu0 0.0
    %162 = vmatprep.subr.mxu0 0.0
    %163 = vmatpush1.msra.mxu0 0.0
    %164 = vmatprep.mubr.f32.mxu0 0.0
    %165 = vmatmul.mubr.f32.gmra.mrb[0].mxu0 %v45
    %v166 = vpop.f32.mrb[0].mxu0
    %v167 = vadd.f32 %v98, %v166
    %v168 = vpop.f32.mrb[0].mxu0
    %169 = vmatprep.mubr.f32.mxu0 0.0
    %170 = vmatmul.mubr.f32.gmra.mrb[0].mxu0 %v46
    %v171 = vpop.f32.mrb[0].mxu0
    %v172 = vadd.f32 %v98, %v171
    %v173 = vpop.f32.mrb[0].mxu0
    %174 = vmatprep.mubr.f32.mxu0 0.0
    %175 = vmatmul.mubr.f32.gmra.mrb[0].mxu0 %v47
    %v176 = vpop.f32.mrb[0].mxu0
    %v177 = vadd.f32 %v98, %v176
    %v178 = vpop.f32.mrb[0].mxu0
    %179 = vmatprep.mubr.f32.mxu0 0.0
    %180 = vmatmul.mubr.f32.gmra.mrb[0].mxu0 %v48
    %v181 = vpop.f32.mrb[0].mxu0
    %v182 = vadd.f32 %v98, %v181
    %v183 = vpop.f32.mrb[0].mxu0
    %184 = vmatprep.mubr.f32.mxu0 0.0
    %185 = vmatmul.mubr.f32.gmra.mrb[0].mxu0 %v49
    %v186 = vpop.f32.mrb[0].mxu0
    %v187 = vadd.f32 %v98, %v186
    %v188 = vpop.f32.mrb[0].mxu0
    %189 = vmatprep.mubr.f32.mxu0 0.0
    %190 = vmatmul.mubr.f32.gmra.mrb[0].mxu0 %v50
    %v191 = vpop.f32.mrb[0].mxu0
    %v192 = vadd.f32 %v98, %v191
    %v193 = vpop.f32.mrb[0].mxu0
    %194 = vmatprep.mubr.f32.mxu0 0.0
    %195 = vmatmul.mubr.f32.gmra.mrb[0].mxu0 %v51
    %v196 = vpop.f32.mrb[0].mxu0
    %v197 = vadd.f32 %v98, %v196
    %v198 = vpop.f32.mrb[0].mxu0
    %199 = vmatprep.mubr.f32.mxu0 0.0
    %200 = vmatmul.mubr.f32.gmra.mrb[0].mxu0 %v52
    %v201 = vpop.f32.mrb[0].mxu0
    %v202 = vadd.f32 %v98, %v201
    %v203 = vpop.f32.mrb[0].mxu0
    %204 = vmatprep.mubr.f32.mxu0 0.0
    %205 = vmatmul.mubr.f32.gmra.mrb[0].mxu0 %v53
    %v206 = vpop.f32.mrb[0].mxu0
    %v207 = vadd.f32 %v98, %v206
    %v208 = vpop.f32.mrb[0].mxu0
    %209 = vmatprep.mubr.f32.mxu0 0.0
    %210 = vmatmul.mubr.f32.gmra.mrb[0].mxu0 %v54
    %v211 = vpop.f32.mrb[0].mxu0
    %v212 = vadd.f32 %v98, %v211
    %v213 = vpop.f32.mrb[0].mxu0
    %214 = vmatprep.mubr.f32.mxu0 0.0
    %215 = vmatmul.mubr.f32.gmra.mrb[0].mxu0 %v55
    %v216 = vpop.f32.mrb[0].mxu0
    %v217 = vadd.f32 %v98, %v216
    %v218 = vpop.f32.mrb[0].mxu0
    %219 = vmatprep.mubr.f32.mxu0 0.0
    %220 = vmatmul.mubr.f32.gmra.mrb[0].mxu0 %v56
    %v221 = vpop.f32.mrb[0].mxu0
    %v222 = vadd.f32 %v98, %v221
    %v223 = vpop.f32.mrb[0].mxu0
    %224 = vmatprep.mubr.f32.mxu0 0.0
    %225 = vmatmul.mubr.f32.gmra.mrb[0].mxu0 %v57
    %v226 = vpop.f32.mrb[0].mxu0
    %v227 = vadd.f32 %v98, %v226
    %v228 = vpop.f32.mrb[0].mxu0
    %229 = vmatprep.mubr.f32.mxu0 0.0
    %230 = vmatmul.mubr.f32.gmra.mrb[0].mxu0 %v58
    %v231 = vpop.f32.mrb[0].mxu0
    %v232 = vadd.f32 %v98, %v231
    %v233 = vpop.f32.mrb[0].mxu0
    %234 = vmatprep.mubr.f32.mxu0 0.0
    %235 = vmatmul.mubr.f32.gmra.mrb[0].mxu0 %v59
    %v236 = vpop.f32.mrb[0].mxu0
    %v237 = vadd.f32 %v98, %v236
    %v238 = vpop.f32.mrb[0].mxu0
    %239 = vmatprep.mubr.f32.mxu0 0.0
    %240 = vmatmul.mubr.f32.gmra.mrb[0].mxu0 %v60
    %v241 = vpop.f32.mrb[0].mxu0
    %v242 = vadd.f32 %v98, %v241
    %v243 = vpop.f32.mrb[0].mxu0
    %244 = vmatprep.mubr.f32.mxu0 0.0
    %245 = vmatmul.mubr.f32.gmra.mrb[0].mxu0 %v61
    %v246 = vpop.f32.mrb[0].mxu0
    %v247 = vadd.f32 %v98, %v246
    %v248 = vpop.f32.mrb[0].mxu0
    %249 = vmatprep.mubr.f32.mxu0 0.0
    %250 = vmatmul.mubr.f32.gmra.mrb[0].mxu0 %v62
    %v251 = vpop.f32.mrb[0].mxu0
    %v252 = vadd.f32 %v98, %v251
    %v253 = vpop.f32.mrb[0].mxu0
    %254 = vmatprep.mubr.f32.mxu0 0.0
    %255 = vmatmul.mubr.f32.gmra.mrb[0].mxu0 %v63
    %v256 = vpop.f32.mrb[0].mxu0
    %v257 = vadd.f32 %v98, %v256
    %v258 = vpop.f32.mrb[0].mxu0
    %259 = vmatprep.mubr.f32.mxu0 0.0
    %260 = vmatmul.mubr.f32.gmra.mrb[0].mxu0 %v64
    %v261 = vpop.f32.mrb[0].mxu0
    %v262 = vadd.f32 %v98, %v261
    %v263 = vpop.f32.mrb[0].mxu0
    %264 = vmatprep.mubr.f32.mxu0 0.0
    %265 = vmatmul.mubr.f32.gmra.mrb[0].mxu0 %v65
    %v266 = vpop.f32.mrb[0].mxu0
    %v267 = vadd.f32 %v98, %v266
    %v268 = vpop.f32.mrb[0].mxu0
    %269 = vmatprep.mubr.f32.mxu0 0.0
    %270 = vmatmul.mubr.f32.gmra.mrb[0].mxu0 %v66
    %v271 = vpop.f32.mrb[0].mxu0
    %v272 = vadd.f32 %v98, %v271
    %v273 = vpop.f32.mrb[0].mxu0
    %274 = vmatprep.mubr.f32.mxu0 0.0
    %275 = vmatmul.mubr.f32.gmra.mrb[0].mxu0 %v67
    %v276 = vpop.f32.mrb[0].mxu0
    %v277 = vadd.f32 %v98, %v276
    %v278 = vpop.f32.mrb[0].mxu0
    %279 = vmatprep.mubr.f32.mxu0 0.0
    %280 = vmatmul.mubr.f32.gmra.mrb[0].mxu0 %v68
    %v281 = vpop.f32.mrb[0].mxu0
    %v282 = vadd.f32 %v98, %v281
    %v283 = vpop.f32.mrb[0].mxu0
    %284 = vmatprep.mubr.f32.mxu0 0.0
    %285 = vmatmul.mubr.f32.gmra.mrb[0].mxu0 %v69
    %v286 = vpop.f32.mrb[0].mxu0
    %v287 = vadd.f32 %v98, %v286
    %v288 = vpop.f32.mrb[0].mxu0
    %289 = vmatprep.mubr.f32.mxu0 0.0
    %290 = vmatmul.mubr.f32.gmra.mrb[0].mxu0 %v70
    %v291 = vpop.f32.mrb[0].mxu0
    %v292 = vadd.f32 %v98, %v291
    %v293 = vpop.f32.mrb[0].mxu0
    %294 = vmatprep.mubr.f32.mxu0 0.0
    %295 = vmatmul.mubr.f32.gmra.mrb[0].mxu0 %v71
    %v296 = vpop.f32.mrb[0].mxu0
    %v297 = vadd.f32 %v98, %v296
    %v298 = vpop.f32.mrb[0].mxu0
    %299 = vmatprep.mubr.f32.mxu0 0.0
    %300 = vmatmul.mubr.f32.gmra.mrb[0].mxu0 %v72
    %v301 = vpop.f32.mrb[0].mxu0
    %v302 = vadd.f32 %v98, %v301
    %v303 = vpop.f32.mrb[0].mxu0
    %304 = vmatprep.mubr.f32.mxu0 0.0
    %305 = vmatmul.mubr.f32.gmra.mrb[0].mxu0 %v73
    %v306 = vpop.f32.mrb[0].mxu0
    %v307 = vadd.f32 %v98, %v306
    %v308 = vpop.f32.mrb[0].mxu0
    %309 = vmatprep.mubr.f32.mxu0 0.0
    %310 = vmatmul.mubr.f32.gmra.mrb[0].mxu0 %v74
    %v311 = vpop.f32.mrb[0].mxu0
    %v312 = vadd.f32 %v98, %v311
    %v313 = vpop.f32.mrb[0].mxu0
    %314 = vmatprep.mubr.f32.mxu0 0.0
    %315 = vmatmul.mubr.f32.gmra.mrb[0].mxu0 %v75
    %v316 = vpop.f32.mrb[0].mxu0
    %v317 = vadd.f32 %v98, %v316
    %v318 = vpop.f32.mrb[0].mxu0
    %319 = vmatprep.mubr.f32.mxu0 0.0
    %320 = vmatmul.mubr.f32.gmra.mrb[0].mxu0 %v76
    %v321 = vpop.f32.mrb[0].mxu0
    %v322 = vadd.f32 %v98, %v321
    %v323 = vpop.f32.mrb[0].mxu0
    %324 = vdwg.mxu0
    %325 = vst [vmem:[%s3] sm:$0xff] %v167
    %326 = vst [vmem:[%s3 + $0x8] sm:$0xff] %v172
    %327 = vst [vmem:[%s3 + $0x10] sm:$0xff] %v177
    %328 = vst [vmem:[%s3 + $0x18] sm:$0xff] %v182
    %329 = vst [vmem:[%s3 + $0x20] sm:$0xff] %v187
    %330 = vst [vmem:[%s3 + $0x28] sm:$0xff] %v192
    %331 = vst [vmem:[%s3 + $0x30] sm:$0xff] %v197
    %332 = vst [vmem:[%s3 + $0x38] sm:$0xff] %v202
    %333 = vst [vmem:[%s3 + $0x40] sm:$0xff] %v207
    %334 = vst [vmem:[%s3 + $0x48] sm:$0xff] %v212
    %335 = vst [vmem:[%s3 + $0x50] sm:$0xff] %v217
    %336 = vst [vmem:[%s3 + $0x58] sm:$0xff] %v222
    %337 = vst [vmem:[%s3 + $0x60] sm:$0xff] %v227
    %338 = vst [vmem:[%s3 + $0x68] sm:$0xff] %v232
    %339 = vst [vmem:[%s3 + $0x70] sm:$0xff] %v237
    %340 = vst [vmem:[%s3 + $0x78] sm:$0xff] %v242
    %341 = vst [vmem:[%s3 + $0x80] sm:$0xff] %v247
    %342 = vst [vmem:[%s3 + $0x88] sm:$0xff] %v252
    %343 = vst [vmem:[%s3 + $0x90] sm:$0xff] %v257
    %344 = vst [vmem:[%s3 + $0x98] sm:$0xff] %v262
    %345 = vst [vmem:[%s3 + $0xa0] sm:$0xff] %v267
    %346 = vst [vmem:[%s3 + $0xa8] sm:$0xff] %v272
    %347 = vst [vmem:[%s3 + $0xb0] sm:$0xff] %v277
    %348 = vst [vmem:[%s3 + $0xb8] sm:$0xff] %v282
    %349 = vst [vmem:[%s3 + $0xc0] sm:$0xff] %v287
    %350 = vst [vmem:[%s3 + $0xc8] sm:$0xff] %v292
    %351 = vst [vmem:[%s3 + $0xd0] sm:$0xff] %v297
    %352 = vst [vmem:[%s3 + $0xd8] sm:$0xff] %v302
    %353 = vst [vmem:[%s3 + $0xe0] sm:$0xff] %v307
    %354 = vst [vmem:[%s3 + $0xe8] sm:$0xff] %v312
    %355 = vst [vmem:[%s3 + $0xf0] sm:$0xff] %v317
    %356 = vst [vmem:[%s3 + $0xf8] sm:$0xff] %v322
    %357 = vxpose.xlu0.b32.start [1/16] %v167, 128
    %358 = vxpose.xlu0.b32.cont [2/16] %v172, 128
    %359 = vxpose.xlu0.b32.cont [3/16] %v177, 128
    %360 = vxpose.xlu0.b32.cont [4/16] %v182, 128
    %361 = vxpose.xlu0.b32.cont [5/16] %v187, 128
    %362 = vxpose.xlu0.b32.cont [6/16] %v192, 128
    %363 = vxpose.xlu0.b32.cont [7/16] %v197, 128
    %364 = vxpose.xlu0.b32.cont [8/16] %v202, 128
    %365 = vxpose.xlu0.b32.cont [9/16] %v207, 128
    %366 = vxpose.xlu0.b32.cont [10/16] %v212, 128
    %367 = vxpose.xlu0.b32.cont [11/16] %v217, 128
    %368 = vxpose.xlu0.b32.cont [12/16] %v222, 128
    %369 = vxpose.xlu0.b32.cont [13/16] %v227, 128
    %370 = vxpose.xlu0.b32.cont [14/16] %v232, 128
    %371 = vxpose.xlu0.b32.cont [15/16] %v237, 128
    %372 = vxpose.xlu0.b32.end [16/16] %v242, 128
    %v373 = vpop.trf.xlu0
    %v374 = vpop.trf.xlu0
    %v375 = vpop.trf.xlu0
    %v376 = vpop.trf.xlu0
    %v377 = vpop.trf.xlu0
    %v378 = vpop.trf.xlu0
    %v379 = vpop.trf.xlu0
    %v380 = vpop.trf.xlu0
    %v381 = vpop.trf.xlu0
    %v382 = vpop.trf.xlu0
    %v383 = vpop.trf.xlu0
    %v384 = vpop.trf.xlu0
    %v385 = vpop.trf.xlu0
    %v386 = vpop.trf.xlu0
    %v387 = vpop.trf.xlu0
    %v388 = vpop.trf.xlu0
    %389 = vxpose.xlu0.b32.start [1/16] %v247, 128
    %390 = vxpose.xlu0.b32.cont [2/16] %v252, 128
    %391 = vxpose.xlu0.b32.cont [3/16] %v257, 128
    %392 = vxpose.xlu0.b32.cont [4/16] %v262, 128
    %393 = vxpose.xlu0.b32.cont [5/16] %v267, 128
    %394 = vxpose.xlu0.b32.cont [6/16] %v272, 128
    %395 = vxpose.xlu0.b32.cont [7/16] %v277, 128
    %396 = vxpose.xlu0.b32.cont [8/16] %v282, 128
    %397 = vxpose.xlu0.b32.cont [9/16] %v287, 128
    %398 = vxpose.xlu0.b32.cont [10/16] %v292, 128
    %399 = vxpose.xlu0.b32.cont [11/16] %v297, 128
    %400 = vxpose.xlu0.b32.cont [12/16] %v302, 128
    %401 = vxpose.xlu0.b32.cont [13/16] %v307, 128
    %402 = vxpose.xlu0.b32.cont [14/16] %v312, 128
    %403 = vxpose.xlu0.b32.cont [15/16] %v317, 128
    %404 = vxpose.xlu0.b32.end [16/16] %v322, 128
    %v405 = vpop.trf.xlu0
    %v406 = vpop.trf.xlu0
    %v407 = vpop.trf.xlu0
    %v408 = vpop.trf.xlu0
    %v409 = vpop.trf.xlu0
    %v410 = vpop.trf.xlu0
    %v411 = vpop.trf.xlu0
    %v412 = vpop.trf.xlu0
    %v413 = vpop.trf.xlu0
    %v414 = vpop.trf.xlu0
    %v415 = vpop.trf.xlu0
    %v416 = vpop.trf.xlu0
    %v417 = vpop.trf.xlu0
    %v418 = vpop.trf.xlu0
    %v419 = vpop.trf.xlu0
    %v420 = vpop.trf.xlu0
    %v421 = vmul.f32 %v373, -2.0
    %v422 = vmul.f32 %v405, -2.0
    %v423 = vmul.f32 %v374, -2.0
    %v424 = vmul.f32 %v406, -2.0
    %v425 = vmul.f32 %v375, -2.0
    %v426 = vmul.f32 %v407, -2.0
    %v427 = vmul.f32 %v376, -2.0
    %v428 = vmul.f32 %v408, -2.0
    %v429 = vmul.f32 %v377, -2.0
    %v430 = vmul.f32 %v409, -2.0
    %v431 = vmul.f32 %v378, -2.0
    %v432 = vmul.f32 %v410, -2.0
    %v433 = vmul.f32 %v379, -2.0
    %v434 = vmul.f32 %v411, -2.0
    %v435 = vmul.f32 %v380, -2.0
    %v436 = vmul.f32 %v412, -2.0
    %v437 = vmul.f32 %v381, -2.0
    %v438 = vmul.f32 %v413, -2.0
    %v439 = vmul.f32 %v382, -2.0
    %v440 = vmul.f32 %v414, -2.0
    %v441 = vmul.f32 %v383, -2.0
    %v442 = vmul.f32 %v415, -2.0
    %v443 = vmul.f32 %v384, -2.0
    %v444 = vmul.f32 %v416, -2.0
    %v445 = vmul.f32 %v385, -2.0
    %v446 = vmul.f32 %v417, -2.0
    %v447 = vmul.f32 %v386, -2.0
    %v448 = vmul.f32 %v418, -2.0
    %v449 = vmul.f32 %v387, -2.0
    %v450 = vmul.f32 %v419, -2.0
    %v451 = vmul.f32 %v388, -2.0
    %v452 = vmul.f32 %v420, -2.0
    %453 = vst [vmem:[%s4] sm:$0xff] %v421
    %454 = vst [vmem:[%s4 + $0x8] sm:$0xff] %v422
    %455 = vst [vmem:[%s4 + $0x10] sm:$0xff] %v423
    %456 = vst [vmem:[%s4 + $0x18] sm:$0xff] %v424
    %457 = vst [vmem:[%s4 + $0x20] sm:$0xff] %v425
    %458 = vst [vmem:[%s4 + $0x28] sm:$0xff] %v426
    %459 = vst [vmem:[%s4 + $0x30] sm:$0xff] %v427
    %460 = vst [vmem:[%s4 + $0x38] sm:$0xff] %v428
    %461 = vst [vmem:[%s4 + $0x40] sm:$0xff] %v429
    %462 = vst [vmem:[%s4 + $0x48] sm:$0xff] %v430
    %463 = vst [vmem:[%s4 + $0x50] sm:$0xff] %v431
    %464 = vst [vmem:[%s4 + $0x58] sm:$0xff] %v432
    %465 = vst [vmem:[%s4 + $0x60] sm:$0xff] %v433
    %466 = vst [vmem:[%s4 + $0x68] sm:$0xff] %v434
    %467 = vst [vmem:[%s4 + $0x70] sm:$0xff] %v435
    %468 = vst [vmem:[%s4 + $0x78] sm:$0xff] %v436
    %469 = vst [vmem:[%s4 + $0x80] sm:$0xff] %v437
    %470 = vst [vmem:[%s4 + $0x88] sm:$0xff] %v438
    %471 = vst [vmem:[%s4 + $0x90] sm:$0xff] %v439
    %472 = vst [vmem:[%s4 + $0x98] sm:$0xff] %v440
    %473 = vst [vmem:[%s4 + $0xa0] sm:$0xff] %v441
    %474 = vst [vmem:[%s4 + $0xa8] sm:$0xff] %v442
    %475 = vst [vmem:[%s4 + $0xb0] sm:$0xff] %v443
    %476 = vst [vmem:[%s4 + $0xb8] sm:$0xff] %v444
    %477 = vst [vmem:[%s4 + $0xc0] sm:$0xff] %v445
    %478 = vst [vmem:[%s4 + $0xc8] sm:$0xff] %v446
    %479 = vst [vmem:[%s4 + $0xd0] sm:$0xff] %v447
    %480 = vst [vmem:[%s4 + $0xd8] sm:$0xff] %v448
    %481 = vst [vmem:[%s4 + $0xe0] sm:$0xff] %v449
    %482 = vst [vmem:[%s4 + $0xe8] sm:$0xff] %v450
    %483 = vst [vmem:[%s4 + $0xf0] sm:$0xff] %v451
    %484 = vst [vmem:[%s4 + $0xf8] sm:$0xff] %v452
    %v485 = vmul.f32 %v373, %v373
    %v486 = vmul.f32 %v405, %v405
    %v487 = vmul.f32 %v374, %v374
    %v488 = vmul.f32 %v406, %v406
    %v489 = vmul.f32 %v375, %v375
    %v490 = vmul.f32 %v407, %v407
    %v491 = vmul.f32 %v376, %v376
    %v492 = vmul.f32 %v408, %v408
    %v493 = vmul.f32 %v377, %v377
    %v494 = vmul.f32 %v409, %v409
    %v495 = vmul.f32 %v378, %v378
    %v496 = vmul.f32 %v410, %v410
    %v497 = vmul.f32 %v379, %v379
    %v498 = vmul.f32 %v411, %v411
    %v499 = vmul.f32 %v380, %v380
    %v500 = vmul.f32 %v412, %v412
    %v501 = vmul.f32 %v381, %v381
    %v502 = vmul.f32 %v413, %v413
    %v503 = vmul.f32 %v382, %v382
    %v504 = vmul.f32 %v414, %v414
    %v505 = vmul.f32 %v383, %v383
    %v506 = vmul.f32 %v415, %v415
    %v507 = vmul.f32 %v384, %v384
    %v508 = vmul.f32 %v416, %v416
    %v509 = vmul.f32 %v385, %v385
    %v510 = vmul.f32 %v417, %v417
    %v511 = vmul.f32 %v386, %v386
    %v512 = vmul.f32 %v418, %v418
    %v513 = vmul.f32 %v387, %v387
    %v514 = vmul.f32 %v419, %v419
    %v515 = vmul.f32 %v388, %v388
    %v516 = vmul.f32 %v420, %v420
    %v517 = vadd.f32 %v485, %v487
    %v518 = vadd.f32 %v517, %v489
    %v519 = vadd.f32 %v518, %v491
    %v520 = vadd.f32 %v519, %v493
    %v521 = vadd.f32 %v520, %v495
    %v522 = vadd.f32 %v521, %v497
    %v523 = vadd.f32 %v522, %v499
    %v524 = vadd.f32 %v523, %v501
    %v525 = vadd.f32 %v524, %v503
    %v526 = vadd.f32 %v525, %v505
    %v527 = vadd.f32 %v526, %v507
    %v528 = vadd.f32 %v527, %v509
    %v529 = vadd.f32 %v528, %v511
    %v530 = vadd.f32 %v529, %v513
    %v531 = vadd.f32 %v530, %v515
    %v532 = vrot.slane %v531, 4
    %v533 = vadd.f32 %v531, %v532
    %v534 = vrot.slane %v533, 2
    %v535 = vadd.f32 %v533, %v534
    %v536 = vrot.slane %v535, 1
    %v537 = vadd.f32 %v535, %v536
    %v538 = vadd.f32 %v486, %v488
    %v539 = vadd.f32 %v538, %v490
    %v540 = vadd.f32 %v539, %v492
    %v541 = vadd.f32 %v540, %v494
    %v542 = vadd.f32 %v541, %v496
    %v543 = vadd.f32 %v542, %v498
    %v544 = vadd.f32 %v543, %v500
    %v545 = vadd.f32 %v544, %v502
    %v546 = vadd.f32 %v545, %v504
    %v547 = vadd.f32 %v546, %v506
    %v548 = vadd.f32 %v547, %v508
    %v549 = vadd.f32 %v548, %v510
    %v550 = vadd.f32 %v549, %v512
    %v551 = vadd.f32 %v550, %v514
    %v552 = vadd.f32 %v551, %v516
    %v553 = vrot.slane %v552, 4
    %v554 = vadd.f32 %v552, %v553
    %v555 = vrot.slane %v554, 2
    %v556 = vadd.f32 %v554, %v555
    %v557 = vrot.slane %v556, 1
    %v558 = vadd.f32 %v556, %v557
    %v561 = vcombine.low %v537, %v558
    %v563 = vunpack.c.l.s4 1966171168
    %v564 = vunpack.c.0.s8 %v563
    %v565 = vlaneseq
    %v566 = vshrl.u32 %v565, 7
    %v567 = vsub.s32 %v564, %v566
    %v568 = vrot.slane %v561, %v567
    %v570 = vunpack.c.l.s4 1966171168
    %v571 = vunpack.c.0.s8 %v570
    %v572 = vlaneseq
    %v573 = vshrl.u32 %v572, 7
    %v574 = vsub.s32 %v571, %v573
    %v575 = vrot.slane %v568, %v574
    %v577 = vlaneseq
    %vm578 = vcmp.ge.s32.totalorder %v577, 0
    %vm579 = vcmp.lt.s32.totalorder %v577, 256
    %vm580 = vmand %vm578, %vm579
    %581 = vst.msk [vmem:[%s5] sm:$0x3] %vm580, %v575
    // Predicated region
    $region22: #{vector_quantize_forward.2} parent=1 // pred_check
      _
    $region23: #{vector_quantize_forward.2} parent=1 // pred_check_branch
      %583 = sbr.rel (0) target = $region25
    $region24: #{vector_quantize_forward.2} parent=1 // pred_region
      _
    $region25: #{vector_quantize_forward.2} parent=1 // pred_fallthru
      _
    // Predicated region
    $region26: #{vector_quantize_forward.2} parent=1 // pred_check
      _
    $region27: #{vector_quantize_forward.2} parent=1 // pred_check_branch
      %585 = sbr.rel (0) target = $region29
    $region28: #{vector_quantize_forward.2} parent=1 // pred_region
      _
    $region29: #{vector_quantize_forward.2} parent=1 // pred_fallthru
      _
    // Predicated region
    $region30: #{vector_quantize_forward.2} parent=1 // pred_check
      _
    $region31: #{vector_quantize_forward.2} parent=1 // pred_check_branch
      %587 = sbr.rel (0) target = $region33
    $region32: #{vector_quantize_forward.2} parent=1 // pred_region
      _
    $region33: #{vector_quantize_forward.2} parent=1 // pred_fallthru
      _
    // Predicated region
    $region34: #{vector_quantize_forward.2} parent=1 // pred_check
      _
    $region35: #{vector_quantize_forward.2} parent=1 // pred_check_branch
      %589 = sbr.rel (0) target = $region37
    $region36: #{vector_quantize_forward.2} parent=1 // pred_region
      _
    $region37: #{vector_quantize_forward.2} parent=1 // pred_fallthru
      _
    // Predicated region
    $region38: #{vector_quantize_forward.2} parent=1 // pred_check
      _
    $region39: #{vector_quantize_forward.2} parent=1 // pred_check_branch
      %591 = sbr.rel (0) target = $region41
    $region40: #{vector_quantize_forward.2} parent=1 // pred_region
      _
    $region41: #{vector_quantize_forward.2} parent=1 // pred_fallthru
      _
    // Predicated region
    $region42: #{vector_quantize_forward.2} parent=1 // pred_check
      _
    $region43: #{vector_quantize_forward.2} parent=1 // pred_check_branch
      %593 = sbr.rel (0) target = $region45
    $region44: #{vector_quantize_forward.2} parent=1 // pred_region
      _
    $region45: #{vector_quantize_forward.2} parent=1 // pred_fallthru
      _
    %594 = vsyncpa [#allocation3], 1
    %595 = vsyncpa [#allocation5], 1

</llo_original>
